<compile_context>
chip_gen: v7x
topology: tpu7x:2x2x1
jax: 0.10.0
libtpu: 0.0.40
codegen_flags: <defaults>
</compile_context>

<pallas_src>
import jax
import jax.numpy as jnp
from jax.experimental import pallas as pl
from jax.experimental.pallas import tpu as pltpu

F_IN = 4        # real input features (not padded)
H_PAD = 128     # hidden features padded 100 -> 128 (lane-dense for 2nd matmul)
F_OUT_PAD = 8   # output features padded 3 -> 8 (narrow writeback)

TB_MAX = 2048   # max batch tile (feedback: 1024-4096; VMEM stays tiny)
SMALL_B = 512   # below this, use a single grid step (launch latency dominates)


def _round_up(n, m):
    return ((n + m - 1) // m) * m


def irisnet_kernel(x_ref, w1_ref, b1_ref, w2_ref, b2_ref, o_ref):
    # y = relu(x @ W1 + b1) @ W2 + b2
    x = x_ref[...].astype(jnp.bfloat16)                       # [TB, 4]  (VPU cast)
    h = jnp.dot(x, w1_ref[...],
                preferred_element_type=jnp.float32)           # [TB, 128] f32 (MXU)
    h = jnp.maximum(h + b1_ref[...], 0.0)                     # f32 bias + ReLU (VPU)
    y = jnp.dot(h.astype(jnp.bfloat16), w2_ref[...],
                preferred_element_type=jnp.float32)           # [TB, 8] f32 (MXU)
    o_ref[...] = y + b2_ref[...]                              # narrow f32 store


def pack_params(w1, b1, w2, b2):
    """Pack/pad parameters once at init.

    w1: [4, 100], b1: [100], w2: [100, 3], b2: [3]  ([in, out] layout).
    Weights go to bf16; biases stay f32.  Padded hidden cols of w1/b1 are zero,
    padded hidden rows and output cols of w2/b2 are zero, so the [:, :3] slice
    of the kernel output is exact (up to bf16 rounding of the inputs).
    """
    w1p = jnp.zeros((F_IN, H_PAD), jnp.bfloat16).at[:, :100].set(
        w1.astype(jnp.bfloat16))
    b1p = jnp.zeros((1, H_PAD), jnp.float32).at[0, :100].set(b1)
    w2p = jnp.zeros((H_PAD, F_OUT_PAD), jnp.bfloat16).at[:100, :3].set(
        w2.astype(jnp.bfloat16))
    b2p = jnp.zeros((1, F_OUT_PAD), jnp.float32).at[0, :3].set(b2)
    return w1p, b1p, w2p, b2p


def irisnet_forward(x, w1p, b1p, w2p, b2p):
    """x: [B, 4] f32; packed params from pack_params(). Returns [B, 3] f32."""
    B = x.shape[0]

    # Batch tile: single step for small (Iris-sized) batches; for large batches
    # keep >= 2 steps so the parallel grid axis can shard across v7x's 2 TCs.
    b8 = _round_up(B, 8)
    if b8 <= SMALL_B:
        tb = b8
    else:
        tb = min(TB_MAX, _round_up(-(-B // 2), 8))
    grid = (pl.cdiv(B, tb),)   # partial last block is clipped by Pallas

    out_padded = pl.pallas_call(
        irisnet_kernel,
        out_shape=jax.ShapeDtypeStruct((B, F_OUT_PAD), jnp.float32),
        grid=grid,
        in_specs=[
            pl.BlockSpec((tb, F_IN), lambda i: (i, 0)),          # x tile per step
            pl.BlockSpec((F_IN, H_PAD), lambda i: (0, 0)),       # w1: VMEM-resident
            pl.BlockSpec((1, H_PAD), lambda i: (0, 0)),          # b1: VMEM-resident
            pl.BlockSpec((H_PAD, F_OUT_PAD), lambda i: (0, 0)),  # w2: VMEM-resident
            pl.BlockSpec((1, F_OUT_PAD), lambda i: (0, 0)),      # b2: VMEM-resident
        ],
        out_specs=pl.BlockSpec((tb, F_OUT_PAD), lambda i: (i, 0)),
        compiler_params=pltpu.CompilerParams(
            dimension_semantics=("parallel",)),
    )(x, w1p, b1p, w2p, b2p)

    return out_padded[:, :3]


def init_params(key):
    """Deterministic init mimicking nn.Linear shapes (torch [out,in] layout),
    returned in kernel-friendly [in,out] layout, unpadded fp32."""
    k1, k2, k3, k4 = jax.random.split(key, 4)
    w1_t = jax.random.normal(k1, (100, 4), jnp.float32) * 0.1   # fc1.weight [out,in]
    b1 = jax.random.normal(k2, (100,), jnp.float32) * 0.1       # fc1.bias
    w2_t = jax.random.normal(k3, (3, 100), jnp.float32) * 0.1   # fc2.weight [out,in]
    b2 = jax.random.normal(k4, (3,), jnp.float32) * 0.1         # fc2.bias
    return w1_t.T, b1, w2_t.T, b2   # [4,100], [100], [100,3], [3]


if __name__ == "__main__":
    key = jax.random.PRNGKey(0)
    kx, kp = jax.random.split(key)

    B = 32  # small batch of Iris samples (4 features each)
    x = jax.random.normal(kx, (B, 4), jnp.float32)
    w1, b1, w2, b2 = init_params(kp)

    # Pack/pad + bf16-cast parameters exactly once (amortized across calls).
    w1p, b1p, w2p, b2p = pack_params(w1, b1, w2, b2)

    out = irisnet_forward(x, w1p, b1p, w2p, b2p)
    out = jax.block_until_ready(out)
    assert out.shape == (B, 3)

    # Strict reference mirroring the kernel's mixed precision (bf16 operands,
    # f32 accumulation / bias / ReLU).
    f32 = jnp.float32
    xb = x.astype(jnp.bfloat16).astype(f32)
    w1b = w1.astype(jnp.bfloat16).astype(f32)
    w2b = w2.astype(jnp.bfloat16).astype(f32)
    h_ref = jnp.maximum(xb @ w1b + b1[None, :], 0.0)
    ref_bf16 = h_ref.astype(jnp.bfloat16).astype(f32) @ w2b + b2[None, :]
    assert jnp.allclose(out, ref_bf16, atol=1e-4, rtol=1e-4)

    # Loose check against the exact fp32 PyTorch-equivalent forward.
    ref_f32 = jnp.maximum(x @ w1 + b1[None, :], 0.0) @ w2 + b2[None, :]
    assert jnp.allclose(out, ref_f32, atol=5e-2, rtol=5e-2)

    print("KERNEL_OK")
</pallas_src>

<mosaic_0001>
module attributes {stable_mosaic.version = 11 : i64} {
  func.func @irisnet_kernel(%arg0: i32, %arg1: memref<32x4xf32, #tpu.memory_space<vmem>>, %arg2: memref<4x128xbf16, #tpu.memory_space<vmem>>, %arg3: memref<1x128xf32, #tpu.memory_space<vmem>>, %arg4: memref<128x8xbf16, #tpu.memory_space<vmem>>, %arg5: memref<1x8xf32, #tpu.memory_space<vmem>>, %arg6: memref<32x8xf32, #tpu.memory_space<vmem>>) attributes {dimension_semantics = [#tpu.dimension_semantics<parallel>], iteration_bounds = array<i64: 1>, scalar_prefetch = 0 : i64, scratch_operands = 0 : i64, tpu.core_type = #tpu.core_type<tc>, window_params = [{transform_indices = @transform_0, window_bounds = array<i64: 32, 4>}, {pipeline_mode = #tpu.pipeline_mode<synchronous>, transform_indices = @transform_1, window_bounds = array<i64: 4, 128>}, {pipeline_mode = #tpu.pipeline_mode<synchronous>, transform_indices = @transform_2, window_bounds = array<i64: 1, 128>}, {pipeline_mode = #tpu.pipeline_mode<synchronous>, transform_indices = @transform_3, window_bounds = array<i64: 128, 8>}, {pipeline_mode = #tpu.pipeline_mode<synchronous>, transform_indices = @transform_4, window_bounds = array<i64: 1, 8>}, {transform_indices = @transform_5, window_bounds = array<i64: 32, 8>}]} {
    %c0 = arith.constant 0 : index
    %c0_0 = arith.constant 0 : index
    %0 = vector.load %arg1[%c0, %c0_0] : memref<32x4xf32, #tpu.memory_space<vmem>>, vector<32x4xf32>
    %1 = arith.truncf %0 : vector<32x4xf32> to vector<32x4xbf16>
    %c0_1 = arith.constant 0 : index
    %c0_2 = arith.constant 0 : index
    %2 = vector.load %arg2[%c0_1, %c0_2] : memref<4x128xbf16, #tpu.memory_space<vmem>>, vector<4x128xbf16>
    %cst = arith.constant dense<0.000000e+00> : vector<32x128xf32>
    %3 = tpu.matmul %1, %2, %cst {dimension_numbers = #tpu.dot_dimension_numbers<[1], [0], [0], [1], [0, 0, 1, 1], [], []>} : vector<32x4xbf16>, vector<4x128xbf16>, vector<32x128xf32> -> vector<32x128xf32>
    %c0_3 = arith.constant 0 : index
    %c0_4 = arith.constant 0 : index
    %4 = vector.load %arg3[%c0_3, %c0_4] : memref<1x128xf32, #tpu.memory_space<vmem>>, vector<1x128xf32>
    %5 = vector.broadcast %4 : vector<1x128xf32> to vector<32x128xf32>
    %6 = arith.addf %3, %5 : vector<32x128xf32>
    %cst_5 = arith.constant 0.000000e+00 : f32
    %7 = vector.broadcast %cst_5 : f32 to vector<32x128xf32>
    %8 = arith.maximumf %6, %7 : vector<32x128xf32>
    %9 = arith.truncf %8 : vector<32x128xf32> to vector<32x128xbf16>
    %c0_6 = arith.constant 0 : index
    %c0_7 = arith.constant 0 : index
    %10 = vector.load %arg4[%c0_6, %c0_7] : memref<128x8xbf16, #tpu.memory_space<vmem>>, vector<128x8xbf16>
    %cst_8 = arith.constant dense<0.000000e+00> : vector<32x8xf32>
    %11 = tpu.matmul %9, %10, %cst_8 {dimension_numbers = #tpu.dot_dimension_numbers<[1], [0], [0], [1], [0, 0, 1, 1], [], []>} : vector<32x128xbf16>, vector<128x8xbf16>, vector<32x8xf32> -> vector<32x8xf32>
    %c0_9 = arith.constant 0 : index
    %c0_10 = arith.constant 0 : index
    %12 = vector.load %arg5[%c0_9, %c0_10] : memref<1x8xf32, #tpu.memory_space<vmem>>, vector<1x8xf32>
    %13 = vector.broadcast %12 : vector<1x8xf32> to vector<32x8xf32>
    %14 = arith.addf %11, %13 : vector<32x8xf32>
    %c0_11 = arith.constant 0 : index
    %c0_12 = arith.constant 0 : index
    %15 = vector.load %arg6[%c0_11, %c0_12] : memref<32x8xf32, #tpu.memory_space<vmem>>, vector<32x8xf32>
    tpu.vector_store %arg6[%c0_11, %c0_12], %14 {strides = array<i32>} : memref<32x8xf32, #tpu.memory_space<vmem>>, vector<32x8xf32>,
    return
  }
  func.func @transform_0(%arg0: i32) -> (i32, i32) {
    %c0_i32 = arith.constant 0 : i32
    %c0_i32_0 = arith.constant 0 : i32
    return %arg0, %c0_i32 : i32, i32
  }
  func.func @transform_1(%arg0: i32) -> (i32, i32) {
    %c0_i32 = arith.constant 0 : i32
    %c0_i32_0 = arith.constant 0 : i32
    %c0_i32_1 = arith.constant 0 : i32
    return %c0_i32, %c0_i32_0 : i32, i32
  }
  func.func @transform_2(%arg0: i32) -> (i32, i32) {
    %c0_i32 = arith.constant 0 : i32
    %c0_i32_0 = arith.constant 0 : i32
    %c0_i32_1 = arith.constant 0 : i32
    return %c0_i32, %c0_i32_0 : i32, i32
  }
  func.func @transform_3(%arg0: i32) -> (i32, i32) {
    %c0_i32 = arith.constant 0 : i32
    %c0_i32_0 = arith.constant 0 : i32
    %c0_i32_1 = arith.constant 0 : i32
    return %c0_i32, %c0_i32_0 : i32, i32
  }
  func.func @transform_4(%arg0: i32) -> (i32, i32) {
    %c0_i32 = arith.constant 0 : i32
    %c0_i32_0 = arith.constant 0 : i32
    %c0_i32_1 = arith.constant 0 : i32
    return %c0_i32, %c0_i32_0 : i32, i32
  }
  func.func @transform_5(%arg0: i32) -> (i32, i32) {
    %c0_i32 = arith.constant 0 : i32
    %c0_i32_0 = arith.constant 0 : i32
    return %arg0, %c0_i32 : i32, i32
  }
}

</mosaic_0001>

<llo_original>
// kernel: tpu_custom_call.1
$region0: #{tpu_custom_call.1}
  #allocation0 [shape = 'u32[]', space=smem, size = 0x4, offset = 0x4, fixed_abs, tag = 'smem constant byte address 0x4 - core index']
  #allocation1 [shape = 'u32[144,128]{1,0:T(1,128)}', space=vmem, size = 0x12000, scoped, tag = 'internal scratch']
  %s0 = inlined_call_operand.vmem [shape: f32[32,4], index: 0, kind: input, shape index: {}]
  %s1 = inlined_call_operand.vmem [shape: bf16[4,128], index: 1, kind: input, shape index: {}]
  %s2 = inlined_call_operand.vmem [shape: f32[1,128], index: 2, kind: input, shape index: {}]
  %s3 = inlined_call_operand.vmem [shape: bf16[128,8], index: 3, kind: input, shape index: {}]
  %s4 = inlined_call_operand.vmem [shape: f32[1,8], index: 4, kind: input, shape index: {}]
  %s5 = inlined_call_operand.vmem [shape: f32[32,8], index: 5, kind: output, shape index: {}]
  %s6 = sld [smem:[#allocation0]]
  $region30: #{tpu_custom_call.1} parent=0
    _
  %s8 = ssub.s32 1, %s6
  %s9 = scalar_select 0, %s8, %s6
  // Predicated region
  $region2: #{tpu_custom_call.1} parent=0 // pred_check
    _
  $region3: #{tpu_custom_call.1} parent=0 // pred_check_branch
    %11 = sbr.rel (0) target = $region5
  $region4: #{tpu_custom_call.1} parent=0 // pred_region
    _
  $region5: #{tpu_custom_call.1} parent=0 // pred_fallthru
    _
  // Predicated region
  $region6: #{tpu_custom_call.1} parent=0 // pred_check
    _
  $region7: #{tpu_custom_call.1} parent=0 // pred_check_branch
    %13 = sbr.rel (0) target = $region9
  $region8: #{tpu_custom_call.1} parent=0 // pred_region
    _
  $region9: #{tpu_custom_call.1} parent=0 // pred_fallthru
    _
  // Predicated region
  $region10: #{tpu_custom_call.1} parent=0 // pred_check
    _
  $region11: #{tpu_custom_call.1} parent=0 // pred_check_branch
    %15 = sbr.rel (0) target = $region13
  $region12: #{tpu_custom_call.1} parent=0 // pred_region
    _
  $region13: #{tpu_custom_call.1} parent=0 // pred_fallthru
    _
  // Predicated region
  $region14: #{tpu_custom_call.1} parent=0 // pred_check
    _
  $region15: #{tpu_custom_call.1} parent=0 // pred_check_branch
    %17 = sbr.rel (0) target = $region17
  $region16: #{tpu_custom_call.1} parent=0 // pred_region
    _
  $region17: #{tpu_custom_call.1} parent=0 // pred_fallthru
    _
  // Predicated region
  $region18: #{tpu_custom_call.1} parent=0 // pred_check
    _
  $region19: #{tpu_custom_call.1} parent=0 // pred_check_branch
    %19 = sbr.rel (0) target = $region21
  $region20: #{tpu_custom_call.1} parent=0 // pred_region
    _
  $region21: #{tpu_custom_call.1} parent=0 // pred_fallthru
    _
  %v21 = vld [vmem:[%s0] sm:$0xff]
  %v22 = vld [vmem:[%s0 + $0x8] sm:$0xff]
  %v23 = vld [vmem:[%s0 + $0x10] sm:$0xff]
  %v24 = vld [vmem:[%s0 + $0x18] sm:$0xff]
  %v25 = vpack.c.bf16 %v22, %v21
  %v26 = vpack.c.bf16 %v24, %v23
  %v27 = vld [vmem:[%s1] sm:$0x3]
  %v28 = vld [vmem:[%s2] sm:$0x1]
  %v30 = vlaneseq
  %v31 = vshrl.u32 %v30, 7
  %v32 = vsub.s32 0, %v31
  %v33 = vrot.slane %v28, %v32
  %vm35 = vcmask 31744
  %v37 = vsel %vm35, %v25, 0
  %v40 = vsel %vm35, %v26, 0
  %vm42 = vcmask 1041408
  %v44 = vsel %vm42, %v27, 0
  %46 = vmatprep.subr.bf16.mxu0 0
  %47 = vmatpush1.bf16.msra.mxu0 %v44
  %48 = vmatprep.subr.bf16.mxu0 0
  %49 = vmatpush1.bf16.msra.mxu0 0
  %50 = vmatprep.subr.bf16.mxu0 0
  %51 = vmatpush1.bf16.msra.mxu0 0
  %52 = vmatprep.subr.bf16.mxu0 0
  %53 = vmatpush1.bf16.msra.mxu0 0
  %54 = vmatprep.subr.bf16.mxu0 0
  %55 = vmatpush1.bf16.msra.mxu0 0
  %56 = vmatprep.subr.bf16.mxu0 0
  %57 = vmatpush1.bf16.msra.mxu0 0
  %58 = vmatprep.subr.bf16.mxu0 0
  %59 = vmatpush1.bf16.msra.mxu0 0
  %60 = vmatprep.subr.bf16.mxu0 0
  %61 = vmatpush1.bf16.msra.mxu0 0
  %62 = vmatprep.subr.bf16.mxu0 0
  %63 = vmatpush1.bf16.msra.mxu0 0
  %64 = vmatprep.subr.bf16.mxu0 0
  %65 = vmatpush1.bf16.msra.mxu0 0
  %66 = vmatprep.subr.bf16.mxu0 0
  %67 = vmatpush1.bf16.msra.mxu0 0
  %68 = vmatprep.subr.bf16.mxu0 0
  %69 = vmatpush1.bf16.msra.mxu0 0
  %70 = vmatprep.subr.bf16.mxu0 0
  %71 = vmatpush1.bf16.msra.mxu0 0
  %72 = vmatprep.subr.bf16.mxu0 0
  %73 = vmatpush1.bf16.msra.mxu0 0
  %74 = vmatprep.subr.bf16.mxu0 0
  %75 = vmatpush1.bf16.msra.mxu0 0
  %76 = vmatprep.subr.bf16.mxu0 0
  %77 = vmatpush1.bf16.msra.mxu0 0
  %78 = vmatprep.mubr.bf16.mxu0 0
  %79 = vmatmul.mubr.bf16.gmra.mrb[0].mxu0 %v37
  %v80 = vpop.f32.mrb[0].mxu0
  %v81 = vadd.f32 %v33, %v80
  %v82 = vpop.f32.mrb[0].mxu0
  %v83 = vpop.f32.mrb[0].mxu0
  %v84 = vadd.f32 %v33, %v83
  %v85 = vpop.f32.mrb[0].mxu0
  %86 = vmatprep.mubr.bf16.mxu0 0
  %87 = vmatmul.mubr.bf16.gmra.mrb[0].mxu0 %v40
  %v88 = vpop.f32.mrb[0].mxu0
  %v89 = vadd.f32 %v33, %v88
  %v90 = vpop.f32.mrb[0].mxu0
  %v91 = vpop.f32.mrb[0].mxu0
  %v92 = vadd.f32 %v33, %v91
  %v93 = vpop.f32.mrb[0].mxu0
  %94 = vdwg.mxu0
  %v95 = vmax.f32 %v81, 0.0
  %v96 = vmax.f32 %v84, 0.0
  %v97 = vmax.f32 %v89, 0.0
  %v98 = vmax.f32 %v92, 0.0
  %v99 = vpack.c.bf16 %v96, %v95
  %v100 = vpack.c.bf16 %v98, %v97
  %v101 = vld [vmem:[%s3] sm:$0xf]
  %v102 = vld [vmem:[%s3 + $0x4] sm:$0xf]
  %v103 = vld [vmem:[%s3 + $0x8] sm:$0xf]
  %v104 = vld [vmem:[%s3 + $0xc] sm:$0xf]
  %v105 = vld [vmem:[%s3 + $0x10] sm:$0xf]
  %v106 = vld [vmem:[%s3 + $0x14] sm:$0xf]
  %v107 = vld [vmem:[%s3 + $0x18] sm:$0xf]
  %v108 = vld [vmem:[%s3 + $0x1c] sm:$0xf]
  %v109 = vld [vmem:[%s3 + $0x20] sm:$0xf]
  %v110 = vld [vmem:[%s3 + $0x24] sm:$0xf]
  %v111 = vld [vmem:[%s3 + $0x28] sm:$0xf]
  %v112 = vld [vmem:[%s3 + $0x2c] sm:$0xf]
  %v113 = vld [vmem:[%s3 + $0x30] sm:$0xf]
  %v114 = vld [vmem:[%s3 + $0x34] sm:$0xf]
  %v115 = vld [vmem:[%s3 + $0x38] sm:$0xf]
  %v116 = vld [vmem:[%s3 + $0x3c] sm:$0xf]
  %v117 = vld [vmem:[%s4] sm:$0x1]
  %v119 = vlaneseq
  %v120 = vshrl.u32 %v119, 7
  %v121 = vsub.s32 0, %v120
  %v122 = vrot.slane %v117, %v121
  %v140 = vunpack.c.l.b16 %v101
  %v141 = vunpack.c.l.b16 %v102
  %v142 = vunpack.c.l.b16 %v103
  %v143 = vunpack.c.l.b16 %v104
  %v144 = vunpack.c.l.b16 %v105
  %v145 = vunpack.c.l.b16 %v106
  %v146 = vunpack.c.l.b16 %v107
  %v147 = vunpack.c.l.b16 %v108
  %v148 = vunpack.c.l.b16 %v109
  %v149 = vunpack.c.l.b16 %v110
  %v150 = vunpack.c.l.b16 %v111
  %v151 = vunpack.c.l.b16 %v112
  %v152 = vunpack.c.l.b16 %v113
  %v153 = vunpack.c.l.b16 %v114
  %v154 = vunpack.c.l.b16 %v115
  %v155 = vunpack.c.l.b16 %v116
  %v156 = vpack.c.b16 %v141, %v140
  %v157 = vpack.c.b16 %v143, %v142
  %v158 = vpack.c.b16 %v145, %v144
  %v159 = vpack.c.b16 %v147, %v146
  %v160 = vpack.c.b16 %v149, %v148
  %v161 = vpack.c.b16 %v151, %v150
  %v162 = vpack.c.b16 %v153, %v152
  %v163 = vpack.c.b16 %v155, %v154
  %172 = vmatprep.subr.bf16.mxu0 0
  %173 = vmatpush1.bf16.msra.mxu0 %v156
  %174 = vmatprep.subr.bf16.mxu0 0
  %175 = vmatpush1.bf16.msra.mxu0 %v157
  %176 = vmatprep.subr.bf16.mxu0 0
  %177 = vmatpush1.bf16.msra.mxu0 %v158
  %178 = vmatprep.subr.bf16.mxu0 0
  %179 = vmatpush1.bf16.msra.mxu0 %v159
  %180 = vmatprep.subr.bf16.mxu0 0
  %181 = vmatpush1.bf16.msra.mxu0 %v160
  %182 = vmatprep.subr.bf16.mxu0 0
  %183 = vmatpush1.bf16.msra.mxu0 %v161
  %184 = vmatprep.subr.bf16.mxu0 0
  %185 = vmatpush1.bf16.msra.mxu0 %v162
  %186 = vmatprep.subr.bf16.mxu0 0
  %187 = vmatpush1.bf16.msra.mxu0 %v163
  %188 = vmatprep.subr.bf16.mxu0 0
  %189 = vmatpush1.bf16.msra.mxu0 0
  %190 = vmatprep.subr.bf16.mxu0 0
  %191 = vmatpush1.bf16.msra.mxu0 0
  %192 = vmatprep.subr.bf16.mxu0 0
  %193 = vmatpush1.bf16.msra.mxu0 0
  %194 = vmatprep.subr.bf16.mxu0 0
  %195 = vmatpush1.bf16.msra.mxu0 0
  %196 = vmatprep.subr.bf16.mxu0 0
  %197 = vmatpush1.bf16.msra.mxu0 0
  %198 = vmatprep.subr.bf16.mxu0 0
  %199 = vmatpush1.bf16.msra.mxu0 0
  %200 = vmatprep.subr.bf16.mxu0 0
  %201 = vmatpush1.bf16.msra.mxu0 0
  %202 = vmatprep.subr.bf16.mxu0 0
  %203 = vmatpush1.bf16.msra.mxu0 0
  %204 = vmatprep.mubr.bf16.mxu0 0
  %205 = vmatmul.mubr.bf16.gmra.mrb[0].mxu0 %v99
  %v206 = vpop.f32.mrb[0].mxu0
  %v207 = vadd.f32 %v122, %v206
  %v208 = vpop.f32.mrb[0].mxu0
  %v209 = vpop.f32.mrb[0].mxu0
  %v210 = vadd.f32 %v122, %v209
  %v211 = vpop.f32.mrb[0].mxu0
  %212 = vmatprep.mubr.bf16.mxu0 0
  %213 = vmatmul.mubr.bf16.gmra.mrb[0].mxu0 %v100
  %v214 = vpop.f32.mrb[0].mxu0
  %v215 = vadd.f32 %v122, %v214
  %v216 = vpop.f32.mrb[0].mxu0
  %v217 = vpop.f32.mrb[0].mxu0
  %v218 = vadd.f32 %v122, %v217
  %v219 = vpop.f32.mrb[0].mxu0
  %220 = vdwg.mxu0
  %vm221 = vcmask 64512
  %222 = vst.msk [vmem:[%s5] sm:$0xff] %vm221, %v207
  %223 = vst.msk [vmem:[%s5 + $0x8] sm:$0xff] %vm221, %v210
  %224 = vst.msk [vmem:[%s5 + $0x10] sm:$0xff] %vm221, %v215
  %225 = vst.msk [vmem:[%s5 + $0x18] sm:$0xff] %vm221, %v218
  // Predicated region
  $region22: #{tpu_custom_call.1} parent=0 // pred_check
    _
  $region23: #{tpu_custom_call.1} parent=0 // pred_check_branch
    %227 = sbr.rel (0) target = $region25
  $region24: #{tpu_custom_call.1} parent=0 // pred_region
    _
  $region25: #{tpu_custom_call.1} parent=0 // pred_fallthru
    _
  // Predicated region
  $region26: #{tpu_custom_call.1} parent=0 // pred_check
    _
  $region27: #{tpu_custom_call.1} parent=0 // pred_check_branch
    %229 = sbr.rel (0) target = $region29
  $region28: #{tpu_custom_call.1} parent=0 // pred_region
    _
  $region29: #{tpu_custom_call.1} parent=0 // pred_fallthru
    _

</llo_original>
